<compile_context>
chip_gen: v5e
topology: v5e:2x2
jax: 0.10.0
libtpu: 0.0.40
codegen_flags: <defaults>
</compile_context>

<pallas_src>
import jax
import jax.numpy as jnp
from jax.experimental import pallas as pl
from jax.experimental.pallas import tpu as pltpu


# ---------------------------------------------------------------------------
# Pallas kernel: fused per-channel affine normalization for M modalities
#   o[m] = cast_f32(x[m]) * scale[m] + bias[m]
# ---------------------------------------------------------------------------
def _make_norm_kernel(num_modalities):
    def kernel(scale_ref, bias_ref, *refs):
        x_refs = refs[:num_modalities]
        o_refs = refs[num_modalities:]
        for m in range(num_modalities):
            x = x_refs[m][...].astype(jnp.float32)     # cast on the VPU, in VMEM
            o_refs[m][...] = x * scale_ref[m] + bias_ref[m]
    return kernel


def _choose_col_tile(rows, total, bytes_per_elem=4, target_bytes=512 * 1024):
    """Pick a lane-dense column tile (multiple of 128 dividing `total`) whose
    f32 block stays under `target_bytes`; fall back to the full extent."""
    full_bytes = rows * total * bytes_per_elem
    if full_bytes <= target_bytes or total % 128 != 0:
        # Small enough for one block per modality, or the flattened H*W is not
        # a 128-multiple (full array dim is exempt from the (8,128) rule).
        # TODO(synk): tile along H for very large non-128-multiple H*W crops.
        return total
    max_cols = max(128, (target_bytes // (rows * bytes_per_elem)) // 128 * 128)
    for k in range(max_cols // 128, 0, -1):
        t = 128 * k
        if total % t == 0:
            return t
    return 128


def normalize_modalities(tensors, mean_lists, std_lists):
    """Normalize a list of same-shaped (B, C, H, W) tensors with per-channel
    mean/std in ONE fused Pallas launch.  Returns a list of float32 tensors."""
    num_modalities = len(tensors)
    B, C, H, W = tensors[0].shape
    rows = B * C
    total = H * W

    # Tiny per-row affine tables: scale = 1/std, bias = -mean/std, tiled over B.
    scale_rows, bias_rows = [], []
    for m in range(num_modalities):
        std = jnp.asarray(std_lists[m], jnp.float32)
        mean = jnp.asarray(mean_lists[m], jnp.float32)
        s = 1.0 / std
        scale_rows.append(jnp.tile(s, B))          # row = b*C + c  ->  channel c
        bias_rows.append(jnp.tile(-mean * s, B))
    scale_tab = jnp.stack(scale_rows).reshape(num_modalities, rows, 1)
    bias_tab = jnp.stack(bias_rows).reshape(num_modalities, rows, 1)

    # Lane-dense 2-D views (free row-major reshape, no HBM pass).
    flat = [t.reshape(rows, total) for t in tensors]

    tile_cols = _choose_col_tile(rows, total)
    grid = (total // tile_cols,)

    data_spec = pl.BlockSpec((rows, tile_cols), lambda j: (0, j))
    table_spec = pl.BlockSpec((num_modalities, rows, 1), lambda j: (0, 0, 0))

    outs = pl.pallas_call(
        _make_norm_kernel(num_modalities),
        out_shape=tuple(
            jax.ShapeDtypeStruct((rows, total), jnp.float32)
            for _ in range(num_modalities)
        ),
        grid_spec=pltpu.PrefetchScalarGridSpec(
            num_scalar_prefetch=0,
            grid=grid,
            in_specs=[table_spec, table_spec] + [data_spec] * num_modalities,
            out_specs=tuple(data_spec for _ in range(num_modalities)),
        ),
        compiler_params=pltpu.CompilerParams(
            dimension_semantics=("parallel",),
            vmem_limit_bytes=32 * 1024 * 1024,
        ),
    )(scale_tab, bias_tab, *flat)

    return [o.reshape(B, C, H, W) for o in outs]


# ---------------------------------------------------------------------------
# Module-level wrapper mirroring DELIVERDataPreprocessorSimple.forward
# ---------------------------------------------------------------------------
class DELIVERDataPreprocessorSimple:
    def __init__(self, mean=None, std=None, pad_size_divisor=1, pad_value=0.0):
        if mean is None:
            mean = [[0.485, 0.456, 0.406],
                    [0.0, 0.0, 0.0],
                    [0.0, 0.0, 0.0],
                    [0.0, 0.0, 0.0]]
        if std is None:
            std = [[0.229, 0.224, 0.225],
                   [1.0, 1.0, 1.0],
                   [1.0, 1.0, 1.0],
                   [1.0, 1.0, 1.0]]
        self.mean_list = mean
        self.std_list = std
        self.pad_size_divisor = pad_size_divisor
        self.pad_value = pad_value
        # deterministic stand-in for the PyTorch `_dummy` parameter (size 0)
        self._dummy = jnp.zeros((0,), dtype=jnp.float32)

    def _pad_inputs(self, inputs):
        # TODO(synk): fuse padding into the normalization kernel output to
        # avoid an extra HBM pass when pad_size_divisor > 1.
        padded = []
        d = self.pad_size_divisor
        for t in inputs:
            B, C, H, W = t.shape
            pad_h = (d - H % d) % d
            pad_w = (d - W % d) % d
            if pad_h > 0 or pad_w > 0:
                t = jnp.pad(t, ((0, 0), (0, 0), (0, pad_h), (0, pad_w)),
                            constant_values=self.pad_value)
            padded.append(t)
        return padded

    def forward(self, data, training=False):
        inputs = data["inputs"]
        data_samples = data.get("data_samples", [])

        # list-of-tuples (per-batch-sample) -> list of stacked modal tensors
        if isinstance(inputs[0], (tuple, list)):
            num_modalities = len(inputs[0])
            inputs = [
                jnp.stack([jnp.asarray(batch_tuple[m]) for batch_tuple in inputs],
                          axis=0)
                for m in range(num_modalities)
            ]
        else:
            inputs = [jnp.asarray(t) for t in inputs]

        original_shape = tuple(inputs[0].shape[2:])

        # One fused launch when all modalities share a shape; otherwise
        # fall back to one launch per modality (same kernel, M=1).
        if len({tuple(t.shape) for t in inputs}) == 1:
            normalized_inputs = normalize_modalities(
                inputs, self.mean_list, self.std_list)
        else:
            normalized_inputs = []
            for i, modal_tensor in enumerate(inputs):
                normalized_inputs.extend(
                    normalize_modalities([modal_tensor],
                                         [self.mean_list[i]],
                                         [self.std_list[i]]))

        if self.pad_size_divisor > 1:
            normalized_inputs = self._pad_inputs(normalized_inputs)

        final_shape = tuple(normalized_inputs[0].shape[2:])

        # data_samples represented as plain dicts with a 'metainfo' entry
        for ds in data_samples:
            if ds.get("metainfo") is None:
                ds["metainfo"] = {}
            mi = ds["metainfo"]
            mi["ori_shape"] = original_shape
            mi["img_shape"] = original_shape
            mi["pad_shape"] = final_shape
            mi["scale_factor"] = (1.0, 1.0)
            mi["pad_size_divisor"] = self.pad_size_divisor

        data["inputs"] = normalized_inputs
        data["data_samples"] = data_samples
        return data

    __call__ = forward


# ---------------------------------------------------------------------------
if __name__ == "__main__":
    key = jax.random.PRNGKey(0)
    B, C, H, W = 2, 3, 16, 16          # small shapes; 4 modalities, 3 channels each
    num_modalities = 4

    keys = jax.random.split(key, num_modalities)
    modal_tensors = [
        jax.random.uniform(keys[m], (B, C, H, W), dtype=jnp.float32)
        for m in range(num_modalities)
    ]
    # inputs given as list of per-sample tuples (the "restructure" branch)
    inputs = [tuple(modal_tensors[m][b] for m in range(num_modalities))
              for b in range(B)]

    data = {
        "inputs": inputs,
        "data_samples": [{"metainfo": None} for _ in range(B)],
    }

    preprocessor = DELIVERDataPreprocessorSimple(pad_size_divisor=1)
    out = preprocessor(data, training=False)

    norm_inputs = out["inputs"]
    for t in norm_inputs:
        jax.block_until_ready(t)

    # reference check in plain JAX
    ok = True
    for i in range(num_modalities):
        mean = jnp.asarray(preprocessor.mean_list[i], jnp.float32).reshape(1, -1, 1, 1)
        std = jnp.asarray(preprocessor.std_list[i], jnp.float32).reshape(1, -1, 1, 1)
        ref = (modal_tensors[i] - mean) / std
        ok &= bool(jnp.allclose(norm_inputs[i], ref, atol=1e-5, rtol=1e-5))
    assert ok, "Pallas normalization mismatch vs reference"
    assert out["data_samples"][0]["metainfo"]["pad_shape"] == (H, W)
    assert norm_inputs[0].dtype == jnp.float32

    print("KERNEL_OK")
</pallas_src>

<mosaic_0001>
module attributes {stable_mosaic.version = 11 : i64} {
  func.func @kernel(%arg0: i32, %arg1: memref<4x6x1xf32, #tpu.memory_space<vmem>>, %arg2: memref<4x6x1xf32, #tpu.memory_space<vmem>>, %arg3: memref<6x256xf32, #tpu.memory_space<vmem>>, %arg4: memref<6x256xf32, #tpu.memory_space<vmem>>, %arg5: memref<6x256xf32, #tpu.memory_space<vmem>>, %arg6: memref<6x256xf32, #tpu.memory_space<vmem>>, %arg7: memref<6x256xf32, #tpu.memory_space<vmem>>, %arg8: memref<6x256xf32, #tpu.memory_space<vmem>>, %arg9: memref<6x256xf32, #tpu.memory_space<vmem>>, %arg10: memref<6x256xf32, #tpu.memory_space<vmem>>) attributes {dimension_semantics = [#tpu.dimension_semantics<parallel>], iteration_bounds = array<i64: 1>, scalar_prefetch = 0 : i64, scratch_operands = 0 : i64, tpu.core_type = #tpu.core_type<tc>, window_params = [{pipeline_mode = #tpu.pipeline_mode<synchronous>, transform_indices = @transform_0, window_bounds = array<i64: 4, 6, 1>}, {pipeline_mode = #tpu.pipeline_mode<synchronous>, transform_indices = @transform_1, window_bounds = array<i64: 4, 6, 1>}, {transform_indices = @transform_2, window_bounds = array<i64: 6, 256>}, {transform_indices = @transform_3, window_bounds = array<i64: 6, 256>}, {transform_indices = @transform_4, window_bounds = array<i64: 6, 256>}, {transform_indices = @transform_5, window_bounds = array<i64: 6, 256>}, {transform_indices = @transform_6, window_bounds = array<i64: 6, 256>}, {transform_indices = @transform_7, window_bounds = array<i64: 6, 256>}, {transform_indices = @transform_8, window_bounds = array<i64: 6, 256>}, {transform_indices = @transform_9, window_bounds = array<i64: 6, 256>}]} {
    %c0 = arith.constant 0 : index
    %c0_0 = arith.constant 0 : index
    %0 = vector.load %arg3[%c0, %c0_0] : memref<6x256xf32, #tpu.memory_space<vmem>>, vector<6x256xf32>
    %c0_1 = arith.constant 0 : index
    %c0_2 = arith.constant 0 : index
    %c0_3 = arith.constant 0 : index
    %1 = vector.load %arg1[%c0_1, %c0_2, %c0_3] : memref<4x6x1xf32, #tpu.memory_space<vmem>>, vector<1x6x1xf32>
    %2 = vector.shape_cast %1 : vector<1x6x1xf32> to vector<6x1xf32>
    %3 = vector.broadcast %2 : vector<6x1xf32> to vector<6x256xf32>
    %4 = arith.mulf %0, %3 : vector<6x256xf32>
    %c0_4 = arith.constant 0 : index
    %c0_5 = arith.constant 0 : index
    %c0_6 = arith.constant 0 : index
    %5 = vector.load %arg2[%c0_4, %c0_5, %c0_6] : memref<4x6x1xf32, #tpu.memory_space<vmem>>, vector<1x6x1xf32>
    %6 = vector.shape_cast %5 : vector<1x6x1xf32> to vector<6x1xf32>
    %7 = vector.broadcast %6 : vector<6x1xf32> to vector<6x256xf32>
    %8 = arith.addf %4, %7 : vector<6x256xf32>
    %c0_7 = arith.constant 0 : index
    %c0_8 = arith.constant 0 : index
    %9 = vector.load %arg7[%c0_7, %c0_8] : memref<6x256xf32, #tpu.memory_space<vmem>>, vector<6x256xf32>
    tpu.vector_store %arg7[%c0_7, %c0_8], %8 {strides = array<i32>} : memref<6x256xf32, #tpu.memory_space<vmem>>, vector<6x256xf32>,
    %c0_9 = arith.constant 0 : index
    %c0_10 = arith.constant 0 : index
    %10 = vector.load %arg4[%c0_9, %c0_10] : memref<6x256xf32, #tpu.memory_space<vmem>>, vector<6x256xf32>
    %c1 = arith.constant 1 : index
    %c0_11 = arith.constant 0 : index
    %c0_12 = arith.constant 0 : index
    %11 = vector.load %arg1[%c1, %c0_11, %c0_12] : memref<4x6x1xf32, #tpu.memory_space<vmem>>, vector<1x6x1xf32>
    %12 = vector.shape_cast %11 : vector<1x6x1xf32> to vector<6x1xf32>
    %13 = vector.broadcast %12 : vector<6x1xf32> to vector<6x256xf32>
    %14 = arith.mulf %10, %13 : vector<6x256xf32>
    %c1_13 = arith.constant 1 : index
    %c0_14 = arith.constant 0 : index
    %c0_15 = arith.constant 0 : index
    %15 = vector.load %arg2[%c1_13, %c0_14, %c0_15] : memref<4x6x1xf32, #tpu.memory_space<vmem>>, vector<1x6x1xf32>
    %16 = vector.shape_cast %15 : vector<1x6x1xf32> to vector<6x1xf32>
    %17 = vector.broadcast %16 : vector<6x1xf32> to vector<6x256xf32>
    %18 = arith.addf %14, %17 : vector<6x256xf32>
    %c0_16 = arith.constant 0 : index
    %c0_17 = arith.constant 0 : index
    %19 = vector.load %arg8[%c0_16, %c0_17] : memref<6x256xf32, #tpu.memory_space<vmem>>, vector<6x256xf32>
    tpu.vector_store %arg8[%c0_16, %c0_17], %18 {strides = array<i32>} : memref<6x256xf32, #tpu.memory_space<vmem>>, vector<6x256xf32>,
    %c0_18 = arith.constant 0 : index
    %c0_19 = arith.constant 0 : index
    %20 = vector.load %arg5[%c0_18, %c0_19] : memref<6x256xf32, #tpu.memory_space<vmem>>, vector<6x256xf32>
    %c2 = arith.constant 2 : index
    %c0_20 = arith.constant 0 : index
    %c0_21 = arith.constant 0 : index
    %21 = vector.load %arg1[%c2, %c0_20, %c0_21] : memref<4x6x1xf32, #tpu.memory_space<vmem>>, vector<1x6x1xf32>
    %22 = vector.shape_cast %21 : vector<1x6x1xf32> to vector<6x1xf32>
    %23 = vector.broadcast %22 : vector<6x1xf32> to vector<6x256xf32>
    %24 = arith.mulf %20, %23 : vector<6x256xf32>
    %c2_22 = arith.constant 2 : index
    %c0_23 = arith.constant 0 : index
    %c0_24 = arith.constant 0 : index
    %25 = vector.load %arg2[%c2_22, %c0_23, %c0_24] : memref<4x6x1xf32, #tpu.memory_space<vmem>>, vector<1x6x1xf32>
    %26 = vector.shape_cast %25 : vector<1x6x1xf32> to vector<6x1xf32>
    %27 = vector.broadcast %26 : vector<6x1xf32> to vector<6x256xf32>
    %28 = arith.addf %24, %27 : vector<6x256xf32>
    %c0_25 = arith.constant 0 : index
    %c0_26 = arith.constant 0 : index
    %29 = vector.load %arg9[%c0_25, %c0_26] : memref<6x256xf32, #tpu.memory_space<vmem>>, vector<6x256xf32>
    tpu.vector_store %arg9[%c0_25, %c0_26], %28 {strides = array<i32>} : memref<6x256xf32, #tpu.memory_space<vmem>>, vector<6x256xf32>,
    %c0_27 = arith.constant 0 : index
    %c0_28 = arith.constant 0 : index
    %30 = vector.load %arg6[%c0_27, %c0_28] : memref<6x256xf32, #tpu.memory_space<vmem>>, vector<6x256xf32>
    %c3 = arith.constant 3 : index
    %c0_29 = arith.constant 0 : index
    %c0_30 = arith.constant 0 : index
    %31 = vector.load %arg1[%c3, %c0_29, %c0_30] : memref<4x6x1xf32, #tpu.memory_space<vmem>>, vector<1x6x1xf32>
    %32 = vector.shape_cast %31 : vector<1x6x1xf32> to vector<6x1xf32>
    %33 = vector.broadcast %32 : vector<6x1xf32> to vector<6x256xf32>
    %34 = arith.mulf %30, %33 : vector<6x256xf32>
    %c3_31 = arith.constant 3 : index
    %c0_32 = arith.constant 0 : index
    %c0_33 = arith.constant 0 : index
    %35 = vector.load %arg2[%c3_31, %c0_32, %c0_33] : memref<4x6x1xf32, #tpu.memory_space<vmem>>, vector<1x6x1xf32>
    %36 = vector.shape_cast %35 : vector<1x6x1xf32> to vector<6x1xf32>
    %37 = vector.broadcast %36 : vector<6x1xf32> to vector<6x256xf32>
    %38 = arith.addf %34, %37 : vector<6x256xf32>
    %c0_34 = arith.constant 0 : index
    %c0_35 = arith.constant 0 : index
    %39 = vector.load %arg10[%c0_34, %c0_35] : memref<6x256xf32, #tpu.memory_space<vmem>>, vector<6x256xf32>
    tpu.vector_store %arg10[%c0_34, %c0_35], %38 {strides = array<i32>} : memref<6x256xf32, #tpu.memory_space<vmem>>, vector<6x256xf32>,
    return
  }
  func.func @transform_0(%arg0: i32) -> (i32, i32, i32) {
    %c0_i32 = arith.constant 0 : i32
    %c0_i32_0 = arith.constant 0 : i32
    %c0_i32_1 = arith.constant 0 : i32
    %c0_i32_2 = arith.constant 0 : i32
    return %c0_i32, %c0_i32_0, %c0_i32_1 : i32, i32, i32
  }
  func.func @transform_1(%arg0: i32) -> (i32, i32, i32) {
    %c0_i32 = arith.constant 0 : i32
    %c0_i32_0 = arith.constant 0 : i32
    %c0_i32_1 = arith.constant 0 : i32
    %c0_i32_2 = arith.constant 0 : i32
    return %c0_i32, %c0_i32_0, %c0_i32_1 : i32, i32, i32
  }
  func.func @transform_2(%arg0: i32) -> (i32, i32) {
    %c0_i32 = arith.constant 0 : i32
    %c0_i32_0 = arith.constant 0 : i32
    return %c0_i32, %arg0 : i32, i32
  }
  func.func @transform_3(%arg0: i32) -> (i32, i32) {
    %c0_i32 = arith.constant 0 : i32
    %c0_i32_0 = arith.constant 0 : i32
    return %c0_i32, %arg0 : i32, i32
  }
  func.func @transform_4(%arg0: i32) -> (i32, i32) {
    %c0_i32 = arith.constant 0 : i32
    %c0_i32_0 = arith.constant 0 : i32
    return %c0_i32, %arg0 : i32, i32
  }
  func.func @transform_5(%arg0: i32) -> (i32, i32) {
    %c0_i32 = arith.constant 0 : i32
    %c0_i32_0 = arith.constant 0 : i32
    return %c0_i32, %arg0 : i32, i32
  }
  func.func @transform_6(%arg0: i32) -> (i32, i32) {
    %c0_i32 = arith.constant 0 : i32
    %c0_i32_0 = arith.constant 0 : i32
    return %c0_i32, %arg0 : i32, i32
  }
  func.func @transform_7(%arg0: i32) -> (i32, i32) {
    %c0_i32 = arith.constant 0 : i32
    %c0_i32_0 = arith.constant 0 : i32
    return %c0_i32, %arg0 : i32, i32
  }
  func.func @transform_8(%arg0: i32) -> (i32, i32) {
    %c0_i32 = arith.constant 0 : i32
    %c0_i32_0 = arith.constant 0 : i32
    return %c0_i32, %arg0 : i32, i32
  }
  func.func @transform_9(%arg0: i32) -> (i32, i32) {
    %c0_i32 = arith.constant 0 : i32
    %c0_i32_0 = arith.constant 0 : i32
    return %c0_i32, %arg0 : i32, i32
  }
}

</mosaic_0001>

<llo_original>
// kernel: tpu_custom_call.1
$region0: #{tpu_custom_call.1}
  #allocation0 [shape = 'u32[]', space=smem, size = 0x4, offset = 0x4, fixed_abs, tag = 'smem constant byte address 0x4 - core index']
  #allocation1 [shape = 'u32[72,128]{1,0:T(1,128)}', space=vmem, size = 0x9000, scoped, tag = 'internal scratch']
  %s0 = inlined_call_operand.vmem [shape: f32[4,6,1], index: 0, kind: input, shape index: {}]
  %s1 = inlined_call_operand.vmem [shape: f32[4,6,1], index: 1, kind: input, shape index: {}]
  %s2 = inlined_call_operand.vmem [shape: f32[6,256], index: 2, kind: input, shape index: {}]
  %s3 = inlined_call_operand.vmem [shape: f32[6,256], index: 3, kind: input, shape index: {}]
  %s4 = inlined_call_operand.vmem [shape: f32[6,256], index: 4, kind: input, shape index: {}]
  %s5 = inlined_call_operand.vmem [shape: f32[6,256], index: 5, kind: input, shape index: {}]
  %s6 = inlined_call_operand.hbm [shape: f32[6,256], index: 6, kind: output, shape index: {0}]
  %s7 = inlined_call_operand.hbm [shape: f32[6,256], index: 7, kind: output, shape index: {1}]
  %s8 = inlined_call_operand.hbm [shape: f32[6,256], index: 8, kind: output, shape index: {2}]
  %s9 = inlined_call_operand.hbm [shape: f32[6,256], index: 9, kind: output, shape index: {3}]
  %10 = xla_tuple %s6, %s7, %s8, %s9
  %s11 = sld [smem:[#allocation0]]
  $region58: #{tpu_custom_call.1} parent=0
    _
  %s13 = ssub.s32 1, %s11
  %s14 = scalar_select 0, %s13, %s11
  $region1: #{tpu_custom_call.1} parent=0
    #allocation2 [shape = 'u8[8192]{0}', space=vmem, size = 0x2000, scoped, tag = 'output window, operand 0, single buffered']
    #allocation3 [shape = 's32[1]{0}', space=sflag, size = 0x4, scoped, tag = 'scoped memory for tpu_custom_call.1']
    #allocation4 [shape = 'u8[8192]{0}', space=vmem, size = 0x2000, scoped, tag = 'output window, operand 1, single buffered']
    #allocation5 [shape = 's32[1]{0}', space=sflag, size = 0x4, scoped, tag = 'scoped memory for tpu_custom_call.1']
    #allocation6 [shape = 'u8[8192]{0}', space=vmem, size = 0x2000, scoped, tag = 'output window, operand 2, single buffered']
    #allocation7 [shape = 'u8[8192]{0}', space=vmem, size = 0x2000, scoped, tag = 'output window, operand 3, single buffered']
    #allocation8 [shape = 's32[1]{0}', space=sflag, size = 0x4, scoped, tag = 'scoped memory for tpu_custom_call.1']
    %15 = vsyncpa [#allocation3], 0
    %16 = vsyncpa [#allocation5], 0
    %17 = vsyncpa [#allocation8], 0
    // Predicated region
    $region2: #{tpu_custom_call.1} parent=1 // pred_check
      _
    $region3: #{tpu_custom_call.1} parent=1 // pred_check_branch
      %19 = sbr.rel (0) target = $region5
    $region4: #{tpu_custom_call.1} parent=1 // pred_region
      _
    $region5: #{tpu_custom_call.1} parent=1 // pred_fallthru
      _
    // Predicated region
    $region6: #{tpu_custom_call.1} parent=1 // pred_check
      _
    $region7: #{tpu_custom_call.1} parent=1 // pred_check_branch
      %21 = sbr.rel (0) target = $region9
    $region8: #{tpu_custom_call.1} parent=1 // pred_region
      _
    $region9: #{tpu_custom_call.1} parent=1 // pred_fallthru
      _
    // Predicated region
    $region10: #{tpu_custom_call.1} parent=1 // pred_check
      _
    $region11: #{tpu_custom_call.1} parent=1 // pred_check_branch
      %23 = sbr.rel (0) target = $region13
    $region12: #{tpu_custom_call.1} parent=1 // pred_region
      _
    $region13: #{tpu_custom_call.1} parent=1 // pred_fallthru
      _
    // Predicated region
    $region14: #{tpu_custom_call.1} parent=1 // pred_check
      _
    $region15: #{tpu_custom_call.1} parent=1 // pred_check_branch
      %25 = sbr.rel (0) target = $region17
    $region16: #{tpu_custom_call.1} parent=1 // pred_region
      _
    $region17: #{tpu_custom_call.1} parent=1 // pred_fallthru
      _
    // Predicated region
    $region18: #{tpu_custom_call.1} parent=1 // pred_check
      _
    $region19: #{tpu_custom_call.1} parent=1 // pred_check_branch
      %27 = sbr.rel (0) target = $region21
    $region20: #{tpu_custom_call.1} parent=1 // pred_region
      _
    $region21: #{tpu_custom_call.1} parent=1 // pred_fallthru
      _
    // Predicated region
    $region22: #{tpu_custom_call.1} parent=1 // pred_check
      _
    $region23: #{tpu_custom_call.1} parent=1 // pred_check_branch
      %29 = sbr.rel (0) target = $region25
    $region24: #{tpu_custom_call.1} parent=1 // pred_region
      _
    $region25: #{tpu_custom_call.1} parent=1 // pred_fallthru
      _
    %v30 = vld [vmem:[%s2] sm:$0x3f]
    %v31 = vld [vmem:[%s2 + $0x8] sm:$0x3f]
    %v32 = vld [vmem:[%s0] sm:$0x3f]
    %34 = vset.pattern.permute.xlu0 0
    %35 = vperm.xlu0 %34, %v32
    %v36 = vpop.permute.xlu0 %35
    %v38 = vmul.f32 %v30, %v36
    %v39 = vmul.f32 %v31, %v36
    %v40 = vld [vmem:[%s1] sm:$0x3f]
    %42 = vset.pattern.permute.xlu0 0
    %43 = vperm.xlu0 %42, %v40
    %v44 = vpop.permute.xlu0 %43
    %v46 = vadd.f32 %v38, %v44
    %v47 = vadd.f32 %v39, %v44
    %48 = vst [vmem:[#allocation2] sm:$0x3f] %v46
    %49 = vst [vmem:[#allocation2 + $0x8] sm:$0x3f] %v47
    %v50 = vld [vmem:[%s3] sm:$0x3f]
    %v51 = vld [vmem:[%s3 + $0x8] sm:$0x3f]
    %s52 = scalar_lea.vmem %s0, 8
    %v53 = vld [vmem:[%s52] sm:$0x3f]
    %55 = vset.pattern.permute.xlu0 0
    %56 = vperm.xlu0 %55, %v53
    %v57 = vpop.permute.xlu0 %56
    %v59 = vmul.f32 %v50, %v57
    %v60 = vmul.f32 %v51, %v57
    %s61 = scalar_lea.vmem %s1, 8
    %v62 = vld [vmem:[%s61] sm:$0x3f]
    %64 = vset.pattern.permute.xlu0 0
    %65 = vperm.xlu0 %64, %v62
    %v66 = vpop.permute.xlu0 %65
    %v68 = vadd.f32 %v59, %v66
    %v69 = vadd.f32 %v60, %v66
    %70 = vst [vmem:[#allocation4] sm:$0x3f] %v68
    %71 = vst [vmem:[#allocation4 + $0x8] sm:$0x3f] %v69
    %v72 = vld [vmem:[%s4] sm:$0x3f]
    %v73 = vld [vmem:[%s4 + $0x8] sm:$0x3f]
    %s74 = scalar_lea.vmem %s0, 16
    %v75 = vld [vmem:[%s74] sm:$0x3f]
    %77 = vset.pattern.permute.xlu0 0
    %78 = vperm.xlu0 %77, %v75
    %v79 = vpop.permute.xlu0 %78
    %v81 = vmul.f32 %v72, %v79
    %v82 = vmul.f32 %v73, %v79
    %s83 = scalar_lea.vmem %s1, 16
    %v84 = vld [vmem:[%s83] sm:$0x3f]
    %86 = vset.pattern.permute.xlu0 0
    %87 = vperm.xlu0 %86, %v84
    %v88 = vpop.permute.xlu0 %87
    %v90 = vadd.f32 %v81, %v88
    %v91 = vadd.f32 %v82, %v88
    %92 = vst [vmem:[#allocation6] sm:$0x3f] %v90
    %93 = vst [vmem:[#allocation6 + $0x8] sm:$0x3f] %v91
    %v94 = vld [vmem:[%s5] sm:$0x3f]
    %v95 = vld [vmem:[%s5 + $0x8] sm:$0x3f]
    %s96 = scalar_lea.vmem %s0, 24
    %v97 = vld [vmem:[%s96] sm:$0x3f]
    %99 = vset.pattern.permute.xlu0 0
    %100 = vperm.xlu0 %99, %v97
    %v101 = vpop.permute.xlu0 %100
    %v103 = vmul.f32 %v94, %v101
    %v104 = vmul.f32 %v95, %v101
    %s105 = scalar_lea.vmem %s1, 24
    %v106 = vld [vmem:[%s105] sm:$0x3f]
    %108 = vset.pattern.permute.xlu0 0
    %109 = vperm.xlu0 %108, %v106
    %v110 = vpop.permute.xlu0 %109
    %v112 = vadd.f32 %v103, %v110
    %v113 = vadd.f32 %v104, %v110
    %114 = vst [vmem:[#allocation7] sm:$0x3f] %v112
    %115 = vst [vmem:[#allocation7 + $0x8] sm:$0x3f] %v113
    // Predicated region
    $region26: #{tpu_custom_call.1} parent=1 // pred_check
      _
    $region27: #{tpu_custom_call.1} parent=1 // pred_check_branch
      %117 = sbr.rel (0) target = $region29
    $region28: #{tpu_custom_call.1} parent=1 // pred_region
      %119 = vsyncadd [#allocation3], 0
      %s121 = sshll.u32 [#allocation2], 4
      %s122 = int_to_ptr.vmem [resolvable:$true] %s121
      %s123 = sshll.u32 %s6, 4
      %s124 = int_to_ptr.hbm [resolvable:$true] %s123
      %126 = dma.vmem_to_hbm [thread:$0]  %s122, 256, %s124, [#allocation3]
    $region29: #{tpu_custom_call.1} parent=1 // pred_fallthru
      _
    // Predicated region
    $region30: #{tpu_custom_call.1} parent=1 // pred_check
      _
    $region31: #{tpu_custom_call.1} parent=1 // pred_check_branch
      %128 = sbr.rel (0) target = $region33
    $region32: #{tpu_custom_call.1} parent=1 // pred_region
      %130 = vsyncadd [#allocation5], 0
      %s132 = sshll.u32 [#allocation4], 4
      %s133 = int_to_ptr.vmem [resolvable:$true] %s132
      %s134 = sshll.u32 %s7, 4
      %s135 = int_to_ptr.hbm [resolvable:$true] %s134
      %137 = dma.vmem_to_hbm [thread:$0]  %s133, 256, %s135, [#allocation5]
    $region33: #{tpu_custom_call.1} parent=1 // pred_fallthru
      _
    // Predicated region
    $region34: #{tpu_custom_call.1} parent=1 // pred_check
      _
    $region35: #{tpu_custom_call.1} parent=1 // pred_check_branch
      %139 = sbr.rel (0) target = $region37
    $region36: #{tpu_custom_call.1} parent=1 // pred_region
      %141 = vsyncadd [#allocation5], 0
      %s143 = sshll.u32 [#allocation6], 4
      %s144 = int_to_ptr.vmem [resolvable:$true] %s143
      %s145 = sshll.u32 %s8, 4
      %s146 = int_to_ptr.hbm [resolvable:$true] %s145
      %148 = dma.vmem_to_hbm [thread:$0]  %s144, 256, %s146, [#allocation5]
    $region37: #{tpu_custom_call.1} parent=1 // pred_fallthru
      _
    // Predicated region
    $region38: #{tpu_custom_call.1} parent=1 // pred_check
      _
    $region39: #{tpu_custom_call.1} parent=1 // pred_check_branch
      %150 = sbr.rel (0) target = $region41
    $region40: #{tpu_custom_call.1} parent=1 // pred_region
      %152 = vsyncadd [#allocation8], 0
      %s154 = sshll.u32 [#allocation7], 4
      %s155 = int_to_ptr.vmem [resolvable:$true] %s154
      %s156 = sshll.u32 %s9, 4
      %s157 = int_to_ptr.hbm [resolvable:$true] %s156
      %159 = dma.vmem_to_hbm [thread:$0]  %s155, 256, %s157, [#allocation8]
    $region41: #{tpu_custom_call.1} parent=1 // pred_fallthru
      _
    // Predicated region
    $region42: #{tpu_custom_call.1} parent=1 // pred_check
      _
    $region43: #{tpu_custom_call.1} parent=1 // pred_check_branch
      %161 = sbr.rel (0) target = $region45
    $region44: #{tpu_custom_call.1} parent=1 // pred_region
      %163 = dma.done [#allocation3], 256
    $region45: #{tpu_custom_call.1} parent=1 // pred_fallthru
      _
    // Predicated region
    $region46: #{tpu_custom_call.1} parent=1 // pred_check
      _
    $region47: #{tpu_custom_call.1} parent=1 // pred_check_branch
      %165 = sbr.rel (0) target = $region49
    $region48: #{tpu_custom_call.1} parent=1 // pred_region
      %167 = dma.done [#allocation5], 256
    $region49: #{tpu_custom_call.1} parent=1 // pred_fallthru
      _
    // Predicated region
    $region50: #{tpu_custom_call.1} parent=1 // pred_check
      _
    $region51: #{tpu_custom_call.1} parent=1 // pred_check_branch
      %169 = sbr.rel (0) target = $region53
    $region52: #{tpu_custom_call.1} parent=1 // pred_region
      %171 = dma.done [#allocation5], 256
    $region53: #{tpu_custom_call.1} parent=1 // pred_fallthru
      _
    // Predicated region
    $region54: #{tpu_custom_call.1} parent=1 // pred_check
      _
    $region55: #{tpu_custom_call.1} parent=1 // pred_check_branch
      %173 = sbr.rel (0) target = $region57
    $region56: #{tpu_custom_call.1} parent=1 // pred_region
      %175 = dma.done [#allocation8], 256
    $region57: #{tpu_custom_call.1} parent=1 // pred_fallthru
      _
    %176 = vsyncpa [#allocation3], 1
    %177 = vsyncpa [#allocation5], 1
    %178 = vsyncpa [#allocation8], 1

</llo_original>
